<compile_context>
chip_gen: v7x
topology: tpu7x:2x2x1
jax: 0.10.0
libtpu: 0.0.40
codegen_flags: <defaults>
</compile_context>

<pallas_src>
import functools

import jax
import jax.numpy as jnp
from jax.experimental import pallas as pl
from jax.experimental.pallas import tpu as pltpu

EPS = 1e-5


def _round_up(x, m):
    return (x + m - 1) // m * m


def _layernorm(x, gamma, beta, eps=EPS):
    # Matches the PyTorch reference LayerNorm:
    #   per-sample mean/std over all features, UNBIASED (N-1) std,
    #   eps added to std (not var), then affine gamma*y + beta.
    # sum(x) and sum(x*x) are independent reductions (shorter XLU chain than the
    # serial mean -> d -> d*d -> sum(d*d) form).
    n = x.shape[1]
    s1 = jnp.sum(x, axis=1, keepdims=True)
    s2 = jnp.sum(x * x, axis=1, keepdims=True)
    mean = s1 * (1.0 / n)
    var = (s2 - s1 * mean) * (1.0 / (n - 1))
    var = jnp.maximum(var, 0.0)            # guard tiny negative from cancellation
    inv = pl.reciprocal(jnp.sqrt(var) + eps, approx=True)   # EUP slot
    return gamma * ((x - mean) * inv) + beta


def _critic_kernel(s_ref, a_ref, w_ref, p_ref, o_ref, cat_ref,
                   *, in_pad, hidden, act_cols):
    # Packed bf16 weight slab: [w1 (in_pad rows) ; w2 (hidden+act_cols rows)].
    w1 = w_ref[0:in_pad, :]
    w2 = w_ref[in_pad:in_pad + hidden + act_cols, :]

    # Packed (8, hidden) f32 param slab.
    b1, g1, be1 = p_ref[0:1, :], p_ref[1:2, :], p_ref[2:3, :]
    b2, g2, be2 = p_ref[3:4, :], p_ref[4:5, :], p_ref[5:6, :]
    w3r = p_ref[6:7, :]        # final layer weight as a (1, hidden) row
    b3 = p_ref[7:8, 0:1]       # final layer bias as a (1, 1) tile

    # input_layer -> LayerNorm -> ReLU   (bf16 MXU, f32 accumulate & LN)
    h = jnp.dot(s_ref[...].astype(jnp.bfloat16), w1,
                preferred_element_type=jnp.float32) + b1
    h = jnp.maximum(_layernorm(h, g1, be1), 0.0)

    # hidden(cat(h, a)): fused single K = hidden + act_cols matmul.
    # Both scratch stores are full 128-lane-aligned slabs (no masked vst).
    cat_ref[:, 0:hidden] = h.astype(jnp.bfloat16)
    cat_ref[:, hidden:hidden + act_cols] = a_ref[...].astype(jnp.bfloat16)
    h2 = jnp.dot(cat_ref[...], w2, preferred_element_type=jnp.float32) + b2
    h2 = jnp.maximum(_layernorm(h2, g2, be2), 0.0)

    # final_layer (out_dim == 1): VPU multiply + lane reduction, written
    # transposed as (1, tb) so the store is lane-dense.
    q = jnp.sum(h2 * w3r, axis=1)                 # (tb,)
    o_ref[...] = q.reshape(o_ref.shape) + b3      # (1, tb)


def pack_params(p):
    """Coalesce the 13 per-layer tensors into one bf16 weight slab + one f32 (8,H) slab."""
    w1, w2h, w2a, w3 = p["w1"], p["w2h"], p["w2a"], p["w3"]
    in_dim, hidden = w1.shape
    act_dim = w2a.shape[0]
    assert w3.shape[1] == 1, "DDPG critic emits a single Q-value (out_dim == 1)"

    in_pad = _round_up(in_dim, 16)                 # bf16 sublane-tile aligned segment
    act_cols = _round_up(max(act_dim, 1), 128)     # lane-width action block for the fused concat

    W = jnp.zeros((in_pad + hidden + act_cols, hidden), jnp.float32)
    W = W.at[:in_dim, :].set(w1)
    W = W.at[in_pad:in_pad + hidden, :].set(w2h)
    W = W.at[in_pad + hidden:in_pad + hidden + act_dim, :].set(w2a)
    W = W.astype(jnp.bfloat16)                     # MXU is bf16-native on v5e/v6e/v7x

    P = jnp.stack(
        [p["b1"][0], p["g1"][0], p["be1"][0],
         p["b2"][0], p["g2"][0], p["be2"][0],
         w3[:, 0],
         jnp.full((hidden,), p["b3"][0, 0], jnp.float32)],
        axis=0,
    ).astype(jnp.float32)                          # (8, hidden)

    return W, P, (in_pad, hidden, act_cols)


def _pick_tile(B8, max_tb):
    """Choose (tb, Bp): big tiles, grid>=2 for larger batches (v7x megacore),
    minimal batch padding, fewest (preferably even) steps."""
    if B8 < 256:
        return B8, B8                    # single tile; megacore gain negligible here
    cands = []
    for k in range(1, max_tb // 128 + 1):
        tb = 128 * k
        Bp = _round_up(B8, tb)
        g = Bp // tb
        if g < 2:
            continue
        cands.append(((Bp - B8, g % 2, g), tb, Bp))
    if not cands:                        # unreachable for B8 >= 256, but be safe
        return B8, B8
    _, tb, Bp = min(cands)
    return tb, Bp


def ddpg_critic_forward(s, a, params, *, tile_b=512):
    B, in_dim = s.shape
    act_dim = a.shape[1]
    W, P, (in_pad, hidden, act_cols) = pack_params(params)

    max_tb = max(128, _round_up(tile_b, 128))
    B8 = _round_up(B, 8)
    tb, Bp = _pick_tile(B8, max_tb)

    # State: pad only what is needed (skip the copy entirely when possible).
    if in_pad == in_dim and Bp == B:
        s_p = s
    elif in_pad == in_dim:
        s_p = jnp.pad(s, ((0, Bp - B), (0, 0)))
    else:
        s_p = jnp.zeros((Bp, in_pad), s.dtype).at[:B, :in_dim].set(s)
    # Action: always widened to act_cols (=128) lanes for the fused layer-2 concat.
    a_p = jnp.zeros((Bp, act_cols), a.dtype).at[:B, :act_dim].set(a)

    kernel = functools.partial(
        _critic_kernel, in_pad=in_pad, hidden=hidden, act_cols=act_cols)

    out_t = pl.pallas_call(
        kernel,
        out_shape=jax.ShapeDtypeStruct((1, Bp), jnp.float32),
        grid=(Bp // tb,),
        in_specs=[
            pl.BlockSpec((tb, in_pad), lambda i: (i, 0)),      # state tile
            pl.BlockSpec((tb, act_cols), lambda i: (i, 0)),    # action tile
            pl.BlockSpec(W.shape, lambda i: (0, 0)),           # weight slab: VMEM-resident
            pl.BlockSpec(P.shape, lambda i: (0, 0)),           # bias/LN/w3 slab: resident
        ],
        out_specs=pl.BlockSpec((1, tb), lambda i: (0, i)),     # lane-dense, transposed
        scratch_shapes=[pltpu.VMEM((tb, hidden + act_cols), jnp.bfloat16)],
        compiler_params=pltpu.CompilerParams(
            dimension_semantics=("parallel",)),                # v7x: shard over 2 TCs
    )(s_p, a_p, W, P)

    return out_t[0, :B].reshape(B, 1)


def init_params(key, input_shape, output_shape, action_dim, hidden):
    assert output_shape == 1, "DDPG critic emits a single Q-value"
    ks = jax.random.split(key, 10)

    def linear_init(kw, kb, fan_in, fan_out):
        bound = 1.0 / jnp.sqrt(jnp.float32(fan_in))
        w = jax.random.uniform(kw, (fan_in, fan_out), jnp.float32, -bound, bound)
        b = jax.random.uniform(kb, (1, fan_out), jnp.float32, -bound, bound)
        return w, b

    w1, b1 = linear_init(ks[0], ks[1], input_shape, hidden)
    w2, b2 = linear_init(ks[2], ks[3], hidden + action_dim, hidden)
    w3, b3 = linear_init(ks[4], ks[5], hidden, output_shape)
    # final_layer.weight/bias *= 0.1
    w3 = w3 * 0.1
    b3 = b3 * 0.1

    g1 = jax.random.uniform(ks[6], (1, hidden), jnp.float32, 0.0, 1.0)
    be1 = jnp.zeros((1, hidden), jnp.float32)
    g2 = jax.random.uniform(ks[7], (1, hidden), jnp.float32, 0.0, 1.0)
    be2 = jnp.zeros((1, hidden), jnp.float32)

    # split the hidden-layer weight into the (hidden) part and the (action) part
    w2h = w2[:hidden, :]
    w2a = w2[hidden:, :]

    return dict(w1=w1, b1=b1, g1=g1, be1=be1,
                w2h=w2h, w2a=w2a, b2=b2, g2=g2, be2=be2,
                w3=w3, b3=b3)


def reference_forward(s, a, p):
    # Pure-JAX f32 reference with exact divides (no approx reciprocal, no bf16).
    def ln(x, g, b):
        n = x.shape[1]
        mean = jnp.mean(x, axis=1, keepdims=True)
        d = x - mean
        std = jnp.sqrt(jnp.sum(d * d, axis=1, keepdims=True) / (n - 1))
        return g * (d / (std + EPS)) + b

    h = jnp.maximum(ln(s @ p["w1"] + p["b1"], p["g1"], p["be1"]), 0.0)
    h2 = jnp.maximum(ln(h @ p["w2h"] + a @ p["w2a"] + p["b2"], p["g2"], p["be2"]), 0.0)
    return h2 @ p["w3"] + p["b3"]


if __name__ == "__main__":
    B = 8
    INPUT_SHAPE = 32     # state dim
    ACTION_DIM = 8
    HIDDEN = 128
    OUTPUT_SHAPE = 1

    key = jax.random.PRNGKey(0)
    k_s, k_a, k_p, k_s2, k_a2 = jax.random.split(key, 5)
    s = jax.random.normal(k_s, (B, INPUT_SHAPE), jnp.float32)
    a = jax.random.normal(k_a, (B, ACTION_DIM), jnp.float32)
    params = init_params(k_p, INPUT_SHAPE, OUTPUT_SHAPE, ACTION_DIM, HIDDEN)

    # single-tile path (small batch)
    out = jax.block_until_ready(ddpg_critic_forward(s, a, params))
    ref = reference_forward(s, a, params)
    assert out.shape == (B, OUTPUT_SHAPE)
    # tolerance relaxed vs pure-f32: bf16 MXU path + EUP approximate reciprocal.
    assert jnp.allclose(out, ref, atol=2e-2, rtol=2e-2), "mismatch vs JAX reference"

    # multi-tile path (grid > 1, padded batch tail, weights stay VMEM-resident)
    B2 = 300
    s2 = jax.random.normal(k_s2, (B2, INPUT_SHAPE), jnp.float32)
    a2 = jax.random.normal(k_a2, (B2, ACTION_DIM), jnp.float32)
    out2 = jax.block_until_ready(ddpg_critic_forward(s2, a2, params))
    ref2 = reference_forward(s2, a2, params)
    assert out2.shape == (B2, OUTPUT_SHAPE)
    assert jnp.allclose(out2, ref2, atol=2e-2, rtol=2e-2), "mismatch (tiled) vs JAX reference"

    print("KERNEL_OK")
</pallas_src>

<mosaic_0001>
module attributes {stable_mosaic.version = 11 : i64} {
  func.func @_critic_kernel(%arg0: i32, %arg1: memref<8x32xf32, #tpu.memory_space<vmem>>, %arg2: memref<8x128xf32, #tpu.memory_space<vmem>>, %arg3: memref<288x128xbf16, #tpu.memory_space<vmem>>, %arg4: memref<8x128xf32, #tpu.memory_space<vmem>>, %arg5: memref<1x8xf32, #tpu.memory_space<vmem>>, %arg6: memref<8x256xbf16, #tpu.memory_space<vmem>>) attributes {dimension_semantics = [#tpu.dimension_semantics<parallel>], iteration_bounds = array<i64: 1>, scalar_prefetch = 0 : i64, scratch_operands = 1 : i64, tpu.core_type = #tpu.core_type<tc>, window_params = [{transform_indices = @transform_0, window_bounds = array<i64: 8, 32>}, {transform_indices = @transform_1, window_bounds = array<i64: 8, 128>}, {pipeline_mode = #tpu.pipeline_mode<synchronous>, transform_indices = @transform_2, window_bounds = array<i64: 288, 128>}, {pipeline_mode = #tpu.pipeline_mode<synchronous>, transform_indices = @transform_3, window_bounds = array<i64: 8, 128>}, {transform_indices = @transform_4, window_bounds = array<i64: 1, 8>}]} {
    %c0 = arith.constant 0 : index
    %c0_0 = arith.constant 0 : index
    %0 = vector.load %arg3[%c0, %c0_0] : memref<288x128xbf16, #tpu.memory_space<vmem>>, vector<32x128xbf16>
    %c32 = arith.constant 32 : index
    %c0_1 = arith.constant 0 : index
    %1 = vector.load %arg3[%c32, %c0_1] : memref<288x128xbf16, #tpu.memory_space<vmem>>, vector<256x128xbf16>
    %c0_2 = arith.constant 0 : index
    %c0_3 = arith.constant 0 : index
    %2 = vector.load %arg4[%c0_2, %c0_3] : memref<8x128xf32, #tpu.memory_space<vmem>>, vector<1x128xf32>
    %c1 = arith.constant 1 : index
    %c0_4 = arith.constant 0 : index
    %3 = vector.load %arg4[%c1, %c0_4] : memref<8x128xf32, #tpu.memory_space<vmem>>, vector<1x128xf32>
    %c2 = arith.constant 2 : index
    %c0_5 = arith.constant 0 : index
    %4 = vector.load %arg4[%c2, %c0_5] : memref<8x128xf32, #tpu.memory_space<vmem>>, vector<1x128xf32>
    %c3 = arith.constant 3 : index
    %c0_6 = arith.constant 0 : index
    %5 = vector.load %arg4[%c3, %c0_6] : memref<8x128xf32, #tpu.memory_space<vmem>>, vector<1x128xf32>
    %c4 = arith.constant 4 : index
    %c0_7 = arith.constant 0 : index
    %6 = vector.load %arg4[%c4, %c0_7] : memref<8x128xf32, #tpu.memory_space<vmem>>, vector<1x128xf32>
    %c5 = arith.constant 5 : index
    %c0_8 = arith.constant 0 : index
    %7 = vector.load %arg4[%c5, %c0_8] : memref<8x128xf32, #tpu.memory_space<vmem>>, vector<1x128xf32>
    %c6 = arith.constant 6 : index
    %c0_9 = arith.constant 0 : index
    %8 = vector.load %arg4[%c6, %c0_9] : memref<8x128xf32, #tpu.memory_space<vmem>>, vector<1x128xf32>
    %c7 = arith.constant 7 : index
    %c0_10 = arith.constant 0 : index
    %9 = vector.load %arg4[%c7, %c0_10] : memref<8x128xf32, #tpu.memory_space<vmem>>, vector<1x1xf32>
    %c0_11 = arith.constant 0 : index
    %c0_12 = arith.constant 0 : index
    %10 = vector.load %arg1[%c0_11, %c0_12] : memref<8x32xf32, #tpu.memory_space<vmem>>, vector<8x32xf32>
    %11 = arith.truncf %10 : vector<8x32xf32> to vector<8x32xbf16>
    %cst = arith.constant dense<0.000000e+00> : vector<8x128xf32>
    %12 = tpu.matmul %11, %0, %cst {dimension_numbers = #tpu.dot_dimension_numbers<[1], [0], [0], [1], [0, 0, 1, 1], [], []>} : vector<8x32xbf16>, vector<32x128xbf16>, vector<8x128xf32> -> vector<8x128xf32>
    %13 = vector.broadcast %2 : vector<1x128xf32> to vector<8x128xf32>
    %14 = arith.addf %12, %13 : vector<8x128xf32>
    %cst_13 = arith.constant dense<0.000000e+00> : vector<8xf32>
    %15 = vector.multi_reduction <add>, %14, %cst_13 [1] : vector<8x128xf32> to vector<8xf32>
    %16 = vector.shape_cast %15 : vector<8xf32> to vector<8x1xf32>
    %17 = arith.mulf %14, %14 : vector<8x128xf32>
    %cst_14 = arith.constant dense<0.000000e+00> : vector<8xf32>
    %18 = vector.multi_reduction <add>, %17, %cst_14 [1] : vector<8x128xf32> to vector<8xf32>
    %19 = vector.shape_cast %18 : vector<8xf32> to vector<8x1xf32>
    %cst_15 = arith.constant 7.812500e-03 : f32
    %20 = vector.broadcast %cst_15 : f32 to vector<8x1xf32>
    %21 = arith.mulf %16, %20 : vector<8x1xf32>
    %22 = arith.mulf %16, %21 : vector<8x1xf32>
    %23 = arith.subf %19, %22 : vector<8x1xf32>
    %cst_16 = arith.constant 0.00787401571 : f32
    %24 = vector.broadcast %cst_16 : f32 to vector<8x1xf32>
    %25 = arith.mulf %23, %24 : vector<8x1xf32>
    %cst_17 = arith.constant 0.000000e+00 : f32
    %26 = vector.broadcast %cst_17 : f32 to vector<8x1xf32>
    %27 = arith.maximumf %25, %26 : vector<8x1xf32>
    %28 = math.sqrt %27 : vector<8x1xf32>
    %cst_18 = arith.constant 9.99999974E-6 : f32
    %29 = vector.broadcast %cst_18 : f32 to vector<8x1xf32>
    %30 = arith.addf %28, %29 : vector<8x1xf32>
    %31 = tpu.reciprocal %30 {approx = true} : vector<8x1xf32> -> vector<8x1xf32>
    %32 = vector.broadcast %21 : vector<8x1xf32> to vector<8x128xf32>
    %33 = arith.subf %14, %32 : vector<8x128xf32>
    %34 = vector.broadcast %31 : vector<8x1xf32> to vector<8x128xf32>
    %35 = arith.mulf %33, %34 : vector<8x128xf32>
    %36 = vector.broadcast %3 : vector<1x128xf32> to vector<8x128xf32>
    %37 = arith.mulf %36, %35 : vector<8x128xf32>
    %38 = vector.broadcast %4 : vector<1x128xf32> to vector<8x128xf32>
    %39 = arith.addf %37, %38 : vector<8x128xf32>
    %cst_19 = arith.constant 0.000000e+00 : f32
    %40 = vector.broadcast %cst_19 : f32 to vector<8x128xf32>
    %41 = arith.maximumf %39, %40 : vector<8x128xf32>
    %42 = arith.truncf %41 : vector<8x128xf32> to vector<8x128xbf16>
    %c0_20 = arith.constant 0 : index
    %c0_21 = arith.constant 0 : index
    %43 = vector.load %arg6[%c0_20, %c0_21] : memref<8x256xbf16, #tpu.memory_space<vmem>>, vector<8x128xbf16>
    tpu.vector_store %arg6[%c0_20, %c0_21], %42 {strides = array<i32>} : memref<8x256xbf16, #tpu.memory_space<vmem>>, vector<8x128xbf16>,
    %c0_22 = arith.constant 0 : index
    %c0_23 = arith.constant 0 : index
    %44 = vector.load %arg2[%c0_22, %c0_23] : memref<8x128xf32, #tpu.memory_space<vmem>>, vector<8x128xf32>
    %45 = arith.truncf %44 : vector<8x128xf32> to vector<8x128xbf16>
    %c0_24 = arith.constant 0 : index
    %c128 = arith.constant 128 : index
    %46 = vector.load %arg6[%c0_24, %c128] : memref<8x256xbf16, #tpu.memory_space<vmem>>, vector<8x128xbf16>
    tpu.vector_store %arg6[%c0_24, %c128], %45 {strides = array<i32>} : memref<8x256xbf16, #tpu.memory_space<vmem>>, vector<8x128xbf16>,
    %c0_25 = arith.constant 0 : index
    %c0_26 = arith.constant 0 : index
    %47 = vector.load %arg6[%c0_25, %c0_26] : memref<8x256xbf16, #tpu.memory_space<vmem>>, vector<8x256xbf16>
    %cst_27 = arith.constant dense<0.000000e+00> : vector<8x128xf32>
    %48 = tpu.matmul %47, %1, %cst_27 {dimension_numbers = #tpu.dot_dimension_numbers<[1], [0], [0], [1], [0, 0, 1, 1], [], []>} : vector<8x256xbf16>, vector<256x128xbf16>, vector<8x128xf32> -> vector<8x128xf32>
    %49 = vector.broadcast %5 : vector<1x128xf32> to vector<8x128xf32>
    %50 = arith.addf %48, %49 : vector<8x128xf32>
    %cst_28 = arith.constant dense<0.000000e+00> : vector<8xf32>
    %51 = vector.multi_reduction <add>, %50, %cst_28 [1] : vector<8x128xf32> to vector<8xf32>
    %52 = vector.shape_cast %51 : vector<8xf32> to vector<8x1xf32>
    %53 = arith.mulf %50, %50 : vector<8x128xf32>
    %cst_29 = arith.constant dense<0.000000e+00> : vector<8xf32>
    %54 = vector.multi_reduction <add>, %53, %cst_29 [1] : vector<8x128xf32> to vector<8xf32>
    %55 = vector.shape_cast %54 : vector<8xf32> to vector<8x1xf32>
    %cst_30 = arith.constant 7.812500e-03 : f32
    %56 = vector.broadcast %cst_30 : f32 to vector<8x1xf32>
    %57 = arith.mulf %52, %56 : vector<8x1xf32>
    %58 = arith.mulf %52, %57 : vector<8x1xf32>
    %59 = arith.subf %55, %58 : vector<8x1xf32>
    %cst_31 = arith.constant 0.00787401571 : f32
    %60 = vector.broadcast %cst_31 : f32 to vector<8x1xf32>
    %61 = arith.mulf %59, %60 : vector<8x1xf32>
    %cst_32 = arith.constant 0.000000e+00 : f32
    %62 = vector.broadcast %cst_32 : f32 to vector<8x1xf32>
    %63 = arith.maximumf %61, %62 : vector<8x1xf32>
    %64 = math.sqrt %63 : vector<8x1xf32>
    %cst_33 = arith.constant 9.99999974E-6 : f32
    %65 = vector.broadcast %cst_33 : f32 to vector<8x1xf32>
    %66 = arith.addf %64, %65 : vector<8x1xf32>
    %67 = tpu.reciprocal %66 {approx = true} : vector<8x1xf32> -> vector<8x1xf32>
    %68 = vector.broadcast %57 : vector<8x1xf32> to vector<8x128xf32>
    %69 = arith.subf %50, %68 : vector<8x128xf32>
    %70 = vector.broadcast %67 : vector<8x1xf32> to vector<8x128xf32>
    %71 = arith.mulf %69, %70 : vector<8x128xf32>
    %72 = vector.broadcast %6 : vector<1x128xf32> to vector<8x128xf32>
    %73 = arith.mulf %72, %71 : vector<8x128xf32>
    %74 = vector.broadcast %7 : vector<1x128xf32> to vector<8x128xf32>
    %75 = arith.addf %73, %74 : vector<8x128xf32>
    %cst_34 = arith.constant 0.000000e+00 : f32
    %76 = vector.broadcast %cst_34 : f32 to vector<8x128xf32>
    %77 = arith.maximumf %75, %76 : vector<8x128xf32>
    %78 = vector.broadcast %8 : vector<1x128xf32> to vector<8x128xf32>
    %79 = arith.mulf %77, %78 : vector<8x128xf32>
    %cst_35 = arith.constant dense<0.000000e+00> : vector<8xf32>
    %80 = vector.multi_reduction <add>, %79, %cst_35 [1] : vector<8x128xf32> to vector<8xf32>
    %81 = vector.shape_cast %80 : vector<8xf32> to vector<1x8xf32>
    %82 = vector.broadcast %9 : vector<1x1xf32> to vector<1x8xf32>
    %83 = arith.addf %81, %82 : vector<1x8xf32>
    %c0_36 = arith.constant 0 : index
    %c0_37 = arith.constant 0 : index
    %84 = vector.load %arg5[%c0_36, %c0_37] : memref<1x8xf32, #tpu.memory_space<vmem>>, vector<1x8xf32>
    tpu.vector_store %arg5[%c0_36, %c0_37], %83 {strides = array<i32>} : memref<1x8xf32, #tpu.memory_space<vmem>>, vector<1x8xf32>,
    return
  }
  func.func @transform_0(%arg0: i32) -> (i32, i32) {
    %c0_i32 = arith.constant 0 : i32
    %c0_i32_0 = arith.constant 0 : i32
    return %arg0, %c0_i32 : i32, i32
  }
  func.func @transform_1(%arg0: i32) -> (i32, i32) {
    %c0_i32 = arith.constant 0 : i32
    %c0_i32_0 = arith.constant 0 : i32
    return %arg0, %c0_i32 : i32, i32
  }
  func.func @transform_2(%arg0: i32) -> (i32, i32) {
    %c0_i32 = arith.constant 0 : i32
    %c0_i32_0 = arith.constant 0 : i32
    %c0_i32_1 = arith.constant 0 : i32
    return %c0_i32, %c0_i32_0 : i32, i32
  }
  func.func @transform_3(%arg0: i32) -> (i32, i32) {
    %c0_i32 = arith.constant 0 : i32
    %c0_i32_0 = arith.constant 0 : i32
    %c0_i32_1 = arith.constant 0 : i32
    return %c0_i32, %c0_i32_0 : i32, i32
  }
  func.func @transform_4(%arg0: i32) -> (i32, i32) {
    %c0_i32 = arith.constant 0 : i32
    %c0_i32_0 = arith.constant 0 : i32
    return %c0_i32, %arg0 : i32, i32
  }
}

</mosaic_0001>

<llo_original>
// kernel: tpu_custom_call.1
$region0: #{tpu_custom_call.1}
  #allocation0 [shape = 'u32[]', space=smem, size = 0x4, offset = 0x4, fixed_abs, tag = 'smem constant byte address 0x4 - core index']
  #allocation1 [shape = 'u32[144,128]{1,0:T(1,128)}', space=vmem, size = 0x12000, scoped, tag = 'internal scratch']
  #allocation2 [shape = 'bf16[8,256]{1,0:T(8,128)(2,1)}', space=vmem, size = 0x1000, scoped, tag = 'scratch operand']
  %s0 = inlined_call_operand.hbm [shape: f32[8,32], index: 0, kind: input, shape index: {}]
  %s1 = inlined_call_operand.hbm [shape: f32[8,128], index: 1, kind: input, shape index: {}]
  %s2 = inlined_call_operand.hbm [shape: bf16[288,128], index: 2, kind: input, shape index: {}]
  %s3 = inlined_call_operand.vmem [shape: f32[8,128], index: 3, kind: input, shape index: {}]
  %s4 = inlined_call_operand.hbm [shape: f32[1,8], index: 4, kind: output, shape index: {}]
  %s5 = sld [smem:[#allocation0]]
  $region38: #{tpu_custom_call.1} parent=0
    _
  %s7 = ssub.s32 1, %s5
  %s8 = scalar_select 0, %s7, %s5
  $region1: #{tpu_custom_call.1} parent=0
    #allocation3 [shape = 'u8[4096]{0}', space=vmem, size = 0x1000, scoped, tag = 'input window, operand 0, single buffered']
    #allocation4 [shape = 's32[1]{0}', space=sflag, size = 0x4, scoped, tag = 'scoped memory for tpu_custom_call.1']
    #allocation5 [shape = 's32[1]{0}', space=sflag, size = 0x4, scoped, tag = 'scoped memory for tpu_custom_call.1']
    #allocation6 [shape = 'u8[4096]{0}', space=vmem, size = 0x1000, scoped, tag = 'input window, operand 1, single buffered']
    #allocation7 [shape = 's32[1]{0}', space=sflag, size = 0x4, scoped, tag = 'scoped memory for tpu_custom_call.1']
    #allocation8 [shape = 'u8[73728]{0}', space=vmem, size = 0x12000, scoped, tag = 'input window, operand 2, single buffered']
    #allocation9 [shape = 'u8[512]{0}', space=vmem, size = 0x400, scoped, tag = 'output window, operand 0, single buffered']
    %9 = vsyncpa [#allocation4], 0
    %10 = vsyncpa [#allocation7], 0
    %11 = vsyncpa [#allocation5], 0
    // Predicated region
    $region2: #{tpu_custom_call.1} parent=1 // pred_check
      _
    $region3: #{tpu_custom_call.1} parent=1 // pred_check_branch
      %13 = sbr.rel (0) target = $region5
    $region4: #{tpu_custom_call.1} parent=1 // pred_region
      %s15 = ssub.s32 128, 128
      %16 = vsyncadd [#allocation4], %s15
      %s18 = sshll.u32 [#allocation3], 4
      %s19 = int_to_ptr.vmem [resolvable:$true] %s18
      %21 = dma.hbm_to_vmem [thread:$0]  %s0, 128, %s19, [#allocation4]
    $region5: #{tpu_custom_call.1} parent=1 // pred_fallthru
      _
    // Predicated region
    $region6: #{tpu_custom_call.1} parent=1 // pred_check
      _
    $region7: #{tpu_custom_call.1} parent=1 // pred_check_branch
      %23 = sbr.rel (0) target = $region9
    $region8: #{tpu_custom_call.1} parent=1 // pred_region
      %s25 = ssub.s32 128, 128
      %26 = vsyncadd [#allocation7], %s25
      %s28 = sshll.u32 [#allocation6], 4
      %s29 = int_to_ptr.vmem [resolvable:$true] %s28
      %31 = dma.hbm_to_vmem [thread:$0]  %s1, 128, %s29, [#allocation7]
    $region9: #{tpu_custom_call.1} parent=1 // pred_fallthru
      _
    // Predicated region
    $region10: #{tpu_custom_call.1} parent=1 // pred_check
      _
    $region11: #{tpu_custom_call.1} parent=1 // pred_check_branch
      %33 = sbr.rel (0) target = $region13
    $region12: #{tpu_custom_call.1} parent=1 // pred_region
      %s35 = ssub.s32 2304, 2304
      %36 = vsyncadd [#allocation7], %s35
      %s37 = sshll.u32 [#allocation8], 4
      %s38 = int_to_ptr.vmem [resolvable:$true] %s37
      %43 = dma.hbm_to_vmem [thread:$0]  %s2, 2304, %s38, [#allocation7], 64, 64, 4
    $region13: #{tpu_custom_call.1} parent=1 // pred_fallthru
      _
    // Predicated region
    $region14: #{tpu_custom_call.1} parent=1 // pred_check
      _
    $region15: #{tpu_custom_call.1} parent=1 // pred_check_branch
      %45 = sbr.rel (0) target = $region17
    $region16: #{tpu_custom_call.1} parent=1 // pred_region
      _
    $region17: #{tpu_custom_call.1} parent=1 // pred_fallthru
      _
    // Predicated region
    $region18: #{tpu_custom_call.1} parent=1 // pred_check
      _
    $region19: #{tpu_custom_call.1} parent=1 // pred_check_branch
      %47 = sbr.rel (0) target = $region21
    $region20: #{tpu_custom_call.1} parent=1 // pred_region
      %48 = dma.done [#allocation4], 128
    $region21: #{tpu_custom_call.1} parent=1 // pred_fallthru
      _
    // Predicated region
    $region22: #{tpu_custom_call.1} parent=1 // pred_check
      _
    $region23: #{tpu_custom_call.1} parent=1 // pred_check_branch
      %50 = sbr.rel (0) target = $region25
    $region24: #{tpu_custom_call.1} parent=1 // pred_region
      %51 = dma.done [#allocation7], 128
    $region25: #{tpu_custom_call.1} parent=1 // pred_fallthru
      _
    // Predicated region
    $region26: #{tpu_custom_call.1} parent=1 // pred_check
      _
    $region27: #{tpu_custom_call.1} parent=1 // pred_check_branch
      %53 = sbr.rel (0) target = $region29
    $region28: #{tpu_custom_call.1} parent=1 // pred_region
      %54 = dma.done [#allocation7], 2304
    $region29: #{tpu_custom_call.1} parent=1 // pred_fallthru
      _
    %v56 = vld [vmem:[#allocation8] sm:$0xf]
    %v57 = vld [vmem:[#allocation8 + $0x4] sm:$0xf]
    %v58 = vld [vmem:[#allocation8 + $0x8] sm:$0xf]
    %v59 = vld [vmem:[#allocation8 + $0xc] sm:$0xf]
    %v60 = vld [vmem:[#allocation8 + $0x10] sm:$0xf]
    %v61 = vld [vmem:[#allocation8 + $0x14] sm:$0xf]
    %v62 = vld [vmem:[#allocation8 + $0x18] sm:$0xf]
    %v63 = vld [vmem:[#allocation8 + $0x1c] sm:$0xf]
    %v64 = vld [vmem:[#allocation8 + $0x20] sm:$0xf]
    %v65 = vld [vmem:[#allocation8 + $0x24] sm:$0xf]
    %v66 = vld [vmem:[#allocation8 + $0x28] sm:$0xf]
    %v67 = vld [vmem:[#allocation8 + $0x2c] sm:$0xf]
    %v68 = vld [vmem:[#allocation8 + $0x30] sm:$0xf]
    %v69 = vld [vmem:[#allocation8 + $0x34] sm:$0xf]
    %v70 = vld [vmem:[#allocation8 + $0x38] sm:$0xf]
    %v71 = vld [vmem:[#allocation8 + $0x3c] sm:$0xf]
    %v72 = vld [vmem:[#allocation8 + $0x40] sm:$0xf]
    %v73 = vld [vmem:[#allocation8 + $0x44] sm:$0xf]
    %v74 = vld [vmem:[#allocation8 + $0x48] sm:$0xf]
    %v75 = vld [vmem:[#allocation8 + $0x4c] sm:$0xf]
    %v76 = vld [vmem:[#allocation8 + $0x50] sm:$0xf]
    %v77 = vld [vmem:[#allocation8 + $0x54] sm:$0xf]
    %v78 = vld [vmem:[#allocation8 + $0x58] sm:$0xf]
    %v79 = vld [vmem:[#allocation8 + $0x5c] sm:$0xf]
    %v80 = vld [vmem:[#allocation8 + $0x60] sm:$0xf]
    %v81 = vld [vmem:[#allocation8 + $0x64] sm:$0xf]
    %v82 = vld [vmem:[#allocation8 + $0x68] sm:$0xf]
    %v83 = vld [vmem:[#allocation8 + $0x6c] sm:$0xf]
    %v84 = vld [vmem:[#allocation8 + $0x70] sm:$0xf]
    %v85 = vld [vmem:[#allocation8 + $0x74] sm:$0xf]
    %v86 = vld [vmem:[#allocation8 + $0x78] sm:$0xf]
    %v87 = vld [vmem:[#allocation8 + $0x7c] sm:$0xf]
    %v88 = vld [vmem:[#allocation8 + $0x80] sm:$0xf]
    %v89 = vld [vmem:[#allocation8 + $0x84] sm:$0xf]
    %v90 = vld [vmem:[#allocation8 + $0x88] sm:$0xf]
    %v91 = vld [vmem:[#allocation8 + $0x8c] sm:$0xf]
    %v92 = vld [vmem:[%s3] sm:$0x1]
    %v93 = vld [vmem:[%s3 + $0x1] sm:$0x1]
    %v94 = vld [vmem:[%s3 + $0x2] sm:$0x1]
    %v95 = vld [vmem:[%s3 + $0x3] sm:$0x1]
    %v96 = vld [vmem:[%s3 + $0x4] sm:$0x1]
    %v97 = vld [vmem:[%s3 + $0x5] sm:$0x1]
    %v98 = vld [vmem:[%s3 + $0x6] sm:$0x1]
    %v99 = vld [vmem:[%s3 + $0x7] sm:$0x1]
    %v100 = vld [vmem:[#allocation3] sm:$0xff]
    %v101 = vpack.c.bf16 %v100, %v100
    %v102 = vlaneseq
    %v103 = vshrl.u32 %v102, 7
    %v104 = vsub.s32 0, %v103
    %v105 = vrot.slane %v92, %v104
    %v110 = vunpack.c.l.b16 %v56
    %v111 = vunpack.c.l.b16 %v57
    %v112 = vunpack.c.l.b16 %v58
    %v113 = vunpack.c.l.b16 %v59
    %v114 = vpack.c.b16 %v111, %v110
    %v115 = vpack.c.b16 %v113, %v112
    %vm118 = vcmask 261120
    %v120 = vsel %vm118, %v101, 0
    %122 = vmatprep.subr.bf16.mxu0 0
    %123 = vmatpush1.bf16.msra.mxu0 %v114
    %124 = vmatprep.subr.bf16.mxu0 0
    %125 = vmatpush1.bf16.msra.mxu0 %v115
    %126 = vmatprep.subr.bf16.mxu0 0
    %127 = vmatpush1.bf16.msra.mxu0 0
    %128 = vmatprep.subr.bf16.mxu0 0
    %129 = vmatpush1.bf16.msra.mxu0 0
    %130 = vmatprep.subr.bf16.mxu0 0
    %131 = vmatpush1.bf16.msra.mxu0 0
    %132 = vmatprep.subr.bf16.mxu0 0
    %133 = vmatpush1.bf16.msra.mxu0 0
    %134 = vmatprep.subr.bf16.mxu0 0
    %135 = vmatpush1.bf16.msra.mxu0 0
    %136 = vmatprep.subr.bf16.mxu0 0
    %137 = vmatpush1.bf16.msra.mxu0 0
    %138 = vmatprep.subr.bf16.mxu0 0
    %139 = vmatpush1.bf16.msra.mxu0 0
    %140 = vmatprep.subr.bf16.mxu0 0
    %141 = vmatpush1.bf16.msra.mxu0 0
    %142 = vmatprep.subr.bf16.mxu0 0
    %143 = vmatpush1.bf16.msra.mxu0 0
    %144 = vmatprep.subr.bf16.mxu0 0
    %145 = vmatpush1.bf16.msra.mxu0 0
    %146 = vmatprep.subr.bf16.mxu0 0
    %147 = vmatpush1.bf16.msra.mxu0 0
    %148 = vmatprep.subr.bf16.mxu0 0
    %149 = vmatpush1.bf16.msra.mxu0 0
    %150 = vmatprep.subr.bf16.mxu0 0
    %151 = vmatpush1.bf16.msra.mxu0 0
    %152 = vmatprep.subr.bf16.mxu0 0
    %153 = vmatpush1.bf16.msra.mxu0 0
    %154 = vmatprep.mubr.bf16.mxu0 0
    %155 = vmatmul.mubr.bf16.gmra.mrb[0].mxu0 %v120
    %v156 = vpop.f32.mrb[0].mxu0
    %v157 = vadd.f32 %v105, %v156
    %v158 = vpop.f32.mrb[0].mxu0
    %v159 = vpop.f32.mrb[0].mxu0
    %v160 = vpop.f32.mrb[0].mxu0
    %161 = vdwg.mxu0
    %162 = vadd.xlane.f32.xlu0 %v157
    %v163 = vpop.xlane.xlu0 %162
    %v164 = vmul.f32 %v157, %v157
    %165 = vadd.xlane.f32.xlu0 %v164
    %v166 = vpop.xlane.xlu0 %165
    %v167 = vmul.f32 %v163, 0.0078125
    %v168 = vmul.f32 %v163, %v167
    %v169 = vsub.f32 %v166, %v168
    %v170 = vmul.f32 %v169, 0.007874016
    %v171 = vmax.f32 %v170, 0.0
    %v172 = vrsqrt.pop %v171
    %v173 = vmul.f32 %v171, %v172
    %vm174 = vcmp.eq.f32.partialorder %v171, inf
    %v175 = vsel %vm174, %v171, %v173
    %vm176 = vcmp.eq.f32.partialorder %v171, 0.0
    %v177 = vand.u32 %v171, 2147483648
    %v178 = vsel %vm176, %v177, %v175
    %v179 = vadd.f32 %v178, 1e-05
    %v180 = vrcp.pop %v179
    %v181 = vsub.f32 %v157, %v167
    %v182 = vmul.f32 %v181, %v180
    %v183 = vlaneseq
    %v184 = vshrl.u32 %v183, 7
    %v185 = vsub.s32 0, %v184
    %v186 = vrot.slane %v93, %v185
    %v187 = vmul.f32 %v186, %v182
    %v188 = vlaneseq
    %v189 = vshrl.u32 %v188, 7
    %v190 = vsub.s32 0, %v189
    %v191 = vrot.slane %v94, %v190
    %v192 = vadd.f32 %v187, %v191
    %v193 = vmax.f32 %v192, 0.0
    %v194 = vpack.c.bf16 %v193, %v193
    %195 = vst [vmem:[#allocation2] sm:$0xf] %v194
    %v196 = vld [vmem:[#allocation6] sm:$0xff]
    %v197 = vpack.c.bf16 %v196, %v196
    %198 = vst [vmem:[#allocation2 + $0x4] sm:$0xf] %v197
    %v199 = vld [vmem:[#allocation2] sm:$0xff]
    %v200 = vlaneseq
    %v201 = vshrl.u32 %v200, 7
    %v202 = vsub.s32 0, %v201
    %v203 = vrot.slane %v95, %v202
    %v205 = vunpack.c.l.b16 %v199
    %v206 = vunpack.c.h.b16 %v199
    %v207 = vpack.c.b16 %v205, %v205
    %v208 = vpack.c.b16 %v206, %v206
    %v243 = vunpack.c.l.b16 %v60
    %v244 = vunpack.c.l.b16 %v61
    %v245 = vunpack.c.l.b16 %v62
    %v246 = vunpack.c.l.b16 %v63
    %v247 = vunpack.c.l.b16 %v64
    %v248 = vunpack.c.l.b16 %v65
    %v249 = vunpack.c.l.b16 %v66
    %v250 = vunpack.c.l.b16 %v67
    %v251 = vunpack.c.l.b16 %v68
    %v252 = vunpack.c.l.b16 %v69
    %v253 = vunpack.c.l.b16 %v70
    %v254 = vunpack.c.l.b16 %v71
    %v255 = vunpack.c.l.b16 %v72
    %v256 = vunpack.c.l.b16 %v73
    %v257 = vunpack.c.l.b16 %v74
    %v258 = vunpack.c.l.b16 %v75
    %v259 = vunpack.c.l.b16 %v76
    %v260 = vunpack.c.l.b16 %v77
    %v261 = vunpack.c.l.b16 %v78
    %v262 = vunpack.c.l.b16 %v79
    %v263 = vunpack.c.l.b16 %v80
    %v264 = vunpack.c.l.b16 %v81
    %v265 = vunpack.c.l.b16 %v82
    %v266 = vunpack.c.l.b16 %v83
    %v267 = vunpack.c.l.b16 %v84
    %v268 = vunpack.c.l.b16 %v85
    %v269 = vunpack.c.l.b16 %v86
    %v270 = vunpack.c.l.b16 %v87
    %v271 = vunpack.c.l.b16 %v88
    %v272 = vunpack.c.l.b16 %v89
    %v273 = vunpack.c.l.b16 %v90
    %v274 = vunpack.c.l.b16 %v91
    %v275 = vpack.c.b16 %v244, %v243
    %v276 = vpack.c.b16 %v246, %v245
    %v277 = vpack.c.b16 %v248, %v247
    %v278 = vpack.c.b16 %v250, %v249
    %v279 = vpack.c.b16 %v252, %v251
    %v280 = vpack.c.b16 %v254, %v253
    %v281 = vpack.c.b16 %v256, %v255
    %v282 = vpack.c.b16 %v258, %v257
    %v283 = vpack.c.b16 %v260, %v259
    %v284 = vpack.c.b16 %v262, %v261
    %v285 = vpack.c.b16 %v264, %v263
    %v286 = vpack.c.b16 %v266, %v265
    %v287 = vpack.c.b16 %v268, %v267
    %v288 = vpack.c.b16 %v270, %v269
    %v289 = vpack.c.b16 %v272, %v271
    %v290 = vpack.c.b16 %v274, %v273
    %307 = vmatprep.subr.bf16.mxu0 0
    %308 = vmatpush1.bf16.msra.mxu0 %v275
    %309 = vmatprep.subr.bf16.mxu0 0
    %310 = vmatpush1.bf16.msra.mxu0 %v276
    %311 = vmatprep.subr.bf16.mxu0 0
    %312 = vmatpush1.bf16.msra.mxu0 %v277
    %313 = vmatprep.subr.bf16.mxu0 0
    %314 = vmatpush1.bf16.msra.mxu0 %v278
    %315 = vmatprep.subr.bf16.mxu0 0
    %316 = vmatpush1.bf16.msra.mxu0 %v279
    %317 = vmatprep.subr.bf16.mxu0 0
    %318 = vmatpush1.bf16.msra.mxu0 %v280
    %319 = vmatprep.subr.bf16.mxu0 0
    %320 = vmatpush1.bf16.msra.mxu0 %v281
    %321 = vmatprep.subr.bf16.mxu0 0
    %322 = vmatpush1.bf16.msra.mxu0 %v282
    %323 = vmatprep.subr.bf16.mxu0 0
    %324 = vmatpush1.bf16.msra.mxu0 %v283
    %325 = vmatprep.subr.bf16.mxu0 0
    %326 = vmatpush1.bf16.msra.mxu0 %v284
    %327 = vmatprep.subr.bf16.mxu0 0
    %328 = vmatpush1.bf16.msra.mxu0 %v285
    %329 = vmatprep.subr.bf16.mxu0 0
    %330 = vmatpush1.bf16.msra.mxu0 %v286
    %331 = vmatprep.subr.bf16.mxu0 0
    %332 = vmatpush1.bf16.msra.mxu0 %v287
    %333 = vmatprep.subr.bf16.mxu0 0
    %334 = vmatpush1.bf16.msra.mxu0 %v288
    %335 = vmatprep.subr.bf16.mxu0 0
    %336 = vmatpush1.bf16.msra.mxu0 %v289
    %337 = vmatprep.subr.bf16.mxu0 0
    %338 = vmatpush1.bf16.msra.mxu0 %v290
    %339 = vmatprep.mubr.bf16.mxu0 %v208
    %340 = vmatmul.mubr.bf16.gmra.mrb[0].mxu0 %v207
    %v341 = vpop.f32.mrb[0].mxu0
    %v342 = vadd.f32 %v203, %v341
    %v343 = vpop.f32.mrb[0].mxu0
    %v344 = vpop.f32.mrb[0].mxu0
    %v345 = vpop.f32.mrb[0].mxu0
    %346 = vdwg.mxu0
    %347 = vadd.xlane.f32.xlu0 %v342
    %v348 = vpop.xlane.xlu0 %347
    %v349 = vmul.f32 %v342, %v342
    %350 = vadd.xlane.f32.xlu0 %v349
    %v351 = vpop.xlane.xlu0 %350
    %v352 = vmul.f32 %v348, 0.0078125
    %v353 = vmul.f32 %v348, %v352
    %v354 = vsub.f32 %v351, %v353
    %v355 = vmul.f32 %v354, 0.007874016
    %v356 = vmax.f32 %v355, 0.0
    %v357 = vrsqrt.pop %v356
    %v358 = vmul.f32 %v356, %v357
    %vm359 = vcmp.eq.f32.partialorder %v356, inf
    %v360 = vsel %vm359, %v356, %v358
    %vm361 = vcmp.eq.f32.partialorder %v356, 0.0
    %v362 = vand.u32 %v356, 2147483648
    %v363 = vsel %vm361, %v362, %v360
    %v364 = vadd.f32 %v363, 1e-05
    %v365 = vrcp.pop %v364
    %v366 = vsub.f32 %v342, %v352
    %v367 = vmul.f32 %v366, %v365
    %v368 = vlaneseq
    %v369 = vshrl.u32 %v368, 7
    %v370 = vsub.s32 0, %v369
    %v371 = vrot.slane %v96, %v370
    %v372 = vmul.f32 %v371, %v367
    %v373 = vlaneseq
    %v374 = vshrl.u32 %v373, 7
    %v375 = vsub.s32 0, %v374
    %v376 = vrot.slane %v97, %v375
    %v377 = vadd.f32 %v372, %v376
    %v378 = vmax.f32 %v377, 0.0
    %v379 = vlaneseq
    %v380 = vshrl.u32 %v379, 7
    %v381 = vsub.s32 0, %v380
    %v382 = vrot.slane %v98, %v381
    %v383 = vmul.f32 %v378, %v382
    %384 = vadd.xlane.f32.xlu0 %v383
    %v385 = vpop.xlane.xlu0 %384
    %387 = vset.pattern.permute.xlu0 0
    %388 = vperm.xlu0 %387, %v99
    %v389 = vpop.permute.xlu0 %388
    %v390 = vlaneseq
    %v391 = vshrl.u32 %v390, 7
    %v392 = vsub.s32 0, %v391
    %v393 = vrot.slane %v389, %v392
    %v395 = vadd.f32 %v385, %v393
    %397 = vset.pattern.permute.xlu0 0
    %398 = vperm.xlu0 %397, %v395
    %v399 = vpop.permute.xlu0 %398
    %v400 = vlaneseq
    %v401 = vand.u32 %v400, 127
    %v402 = vlaneseq
    %v403 = vshrl.u32 %v402, 7
    %v404 = vsub.s32 %v401, %v403
    %v405 = vrot.slane %v399, %v404
    %vm407 = vcmask 57344
    %408 = vst.msk [vmem:[#allocation9] sm:$0x1] %vm407, %v405
    // Predicated region
    $region30: #{tpu_custom_call.1} parent=1 // pred_check
      _
    $region31: #{tpu_custom_call.1} parent=1 // pred_check_branch
      %410 = sbr.rel (0) target = $region33
    $region32: #{tpu_custom_call.1} parent=1 // pred_region
      %s412 = ssub.s32 16, 16
      %413 = vsyncadd [#allocation5], %s412
      %s415 = sshll.u32 [#allocation9], 4
      %s416 = int_to_ptr.vmem [resolvable:$true] %s415
      %418 = dma.vmem_to_hbm [thread:$0]  %s416, 16, %s4, [#allocation5]
    $region33: #{tpu_custom_call.1} parent=1 // pred_fallthru
      _
    // Predicated region
    $region34: #{tpu_custom_call.1} parent=1 // pred_check
      _
    $region35: #{tpu_custom_call.1} parent=1 // pred_check_branch
      %420 = sbr.rel (0) target = $region37
    $region36: #{tpu_custom_call.1} parent=1 // pred_region
      %421 = dma.done [#allocation5], 16
    $region37: #{tpu_custom_call.1} parent=1 // pred_fallthru
      _
    %422 = vsyncpa [#allocation4], 1
    %423 = vsyncpa [#allocation7], 1
    %424 = vsyncpa [#allocation5], 1

</llo_original>
